<compile_context>
chip_gen: v6e
topology: v6e:2x2x1
jax: 0.10.0
libtpu: 0.0.40
codegen_flags: <defaults>
</compile_context>

<pallas_src>
import math

import jax
import jax.numpy as jnp
from jax.experimental import pallas as pl
from jax.experimental.pallas import tpu as pltpu


def _round_up(v, m):
    return (v + m - 1) // m * m


def _vmem_limit_bytes():
    # ~3/4 of physical VMEM (v5e/v6e: 128 MiB -> 96 MiB, v7x: 64 MiB -> 48 MiB).
    try:
        cap = pltpu.get_tpu_info().vmem_capacity_bytes
    except Exception:
        cap = 64 << 20
    return int(cap * 3 // 4)


def _make_agg_kernel(tk, resident_feats, use_scratch):
    """Builds the tiled `out = Ahat @ feats` kernel body (k = reduction axis)."""

    def kernel(a_ref, f_ref, out_ref, *scratch):
        acc_ref = scratch[0] if use_scratch else out_ref
        k = pl.program_id(1)

        @pl.when(k == 0)
        def _init():
            acc_ref[...] = jnp.zeros_like(acc_ref)

        if resident_feats:
            # Whole feature matrix is VMEM-resident; slice the k-th slab.
            start = pl.multiple_of(k * tk, tk)
            feats = f_ref[pl.ds(start, tk), :]
        else:
            feats = f_ref[...]

        # bf16 (or f32) MXU matmul with f32 accumulation.
        acc_ref[...] += jnp.dot(a_ref[...], feats,
                                preferred_element_type=jnp.float32)

        if use_scratch:
            @pl.when(k == pl.num_programs(1) - 1)
            def _finalize():
                out_ref[...] = acc_ref[...].astype(out_ref.dtype)

    return kernel


def _normalized_adjacency_padded(n, n_pad, edge_index, dtype):
    """D^{-1/2}(A + I_missing)D^{-1/2} built directly at padded size."""
    src = edge_index[0]
    dst = edge_index[1]
    a = jnp.zeros((n_pad, n_pad), jnp.float32).at[dst, src].add(1.0)
    idx = jnp.arange(n_pad)
    # add_remaining_self_loops: only real nodes that lack a self-loop.
    missing = (idx < n) & (jnp.diagonal(a) == 0.0)
    a = a.at[idx, idx].add(jnp.where(missing, 1.0, 0.0))
    deg = a.sum(axis=1)
    dinv = jnp.where(deg > 0.0, jax.lax.rsqrt(deg), 0.0)
    return (dinv[:, None] * a * dinv[None, :]).astype(dtype)


def _choose_tiles(n, tm_target, tk_target):
    """(TM, TK, n_pad): multiples of 128, TM | TK, n_pad multiple of both."""
    n128 = _round_up(n, 128)
    tk = min(_round_up(tk_target, 128), n128)
    tm = min(_round_up(tm_target, 128), tk)
    while tk % tm != 0:          # keep TM a divisor of TK (at worst 128)
        tm -= 128
    n_pad = _round_up(n, tk)
    rows = n_pad // tm
    # v7x megacore: prefer an even row-tile count so both TensorCores get
    # equal work (harmless on single-TC v5e/v6e).
    if rows > 1 and rows % 2 == 1 and tm % 256 == 0:
        tm //= 2
    return tm, tk, n_pad


def _aggregate(a_hat, feats_p, n_pad, fp, tm, tk, out_dtype, resident_feats):
    """Tiled out[np, fp] = Ahat[np, np] @ feats[np, fp] via pallas_call."""
    use_scratch = jnp.dtype(out_dtype) != jnp.dtype(jnp.float32)
    kernel = _make_agg_kernel(tk, resident_feats, use_scratch)

    if resident_feats:
        f_spec = pl.BlockSpec((n_pad, fp), lambda i, k: (0, 0))   # loaded once
    else:
        f_spec = pl.BlockSpec((tk, fp), lambda i, k: (k, 0))      # streamed

    scratch_shapes = [pltpu.VMEM((tm, fp), jnp.float32)] if use_scratch else []

    return pl.pallas_call(
        kernel,
        out_shape=jax.ShapeDtypeStruct((n_pad, fp), out_dtype),
        grid_spec=pltpu.PrefetchScalarGridSpec(
            num_scalar_prefetch=0,
            grid=(n_pad // tm, n_pad // tk),
            in_specs=[
                pl.BlockSpec((tm, tk), lambda i, k: (i, k)),  # Ahat tile (bf16)
                f_spec,                                       # features
            ],
            out_specs=pl.BlockSpec((tm, fp), lambda i, k: (i, 0)),
            scratch_shapes=scratch_shapes,
        ),
        compiler_params=pltpu.CompilerParams(
            dimension_semantics=("parallel", "arbitrary"),
            vmem_limit_bytes=_vmem_limit_bytes(),
        ),
    )(a_hat, feats_p)


def gcn_conv(x, edge_index, weight, *, tm_target=256, tk_target=512,
             compute_dtype=jnp.bfloat16):
    """GCNConv forward: out = D^-1/2 (A + I_missing) D^-1/2 @ x @ W (bias=False)."""
    n, dim_in = x.shape
    dim_out = weight.shape[1]
    out_dtype = jnp.result_type(x.dtype, weight.dtype)

    din_p = _round_up(dim_in, 128)
    dout_p = _round_up(dim_out, 128)

    # Aggregate over the narrower padded feature width.
    pre_multiply = dout_p <= din_p
    fp = dout_p if pre_multiply else din_p

    tm, tk, n_pad = _choose_tiles(n, tm_target, tk_target)

    # Dense normalized adjacency, built at padded size, cast once.
    a_hat = _normalized_adjacency_padded(n, n_pad, edge_index, compute_dtype)

    if pre_multiply:
        # y = x @ W: cheap O(N*din*dout) XLA matmul at high precision.
        feats = jnp.dot(x.astype(jnp.float32), weight.astype(jnp.float32),
                        precision=jax.lax.Precision.HIGHEST)
        d_valid = dim_out
    else:
        feats = x.astype(jnp.float32)
        d_valid = dim_in

    feats_p = jnp.zeros((n_pad, fp), compute_dtype).at[:n, :d_valid].set(
        feats.astype(compute_dtype))

    # Keep the feature matrix VMEM-resident when it fits ~half the budget
    # (threshold is chip-dependent: v7x has half the VMEM of v5e/v6e).
    feat_bytes = n_pad * fp * jnp.dtype(compute_dtype).itemsize
    resident_feats = feat_bytes <= _vmem_limit_bytes() // 2

    agg_out_dtype = out_dtype if pre_multiply else jnp.float32
    agg = _aggregate(a_hat, feats_p, n_pad, fp, tm, tk, agg_out_dtype,
                     resident_feats)

    if pre_multiply:
        return agg[:n, :dim_out].astype(out_dtype)
    h = agg[:n, :dim_in].astype(jnp.float32)
    out = jnp.dot(h, weight.astype(jnp.float32),
                  precision=jax.lax.Precision.HIGHEST)
    return out.astype(out_dtype)


def gcn_conv_reference(x, edge_index, weight):
    """Pure-JAX f32 reference (HIGHEST-precision matmuls) for checking."""
    n = x.shape[0]
    a_hat = _normalized_adjacency_padded(n, n, edge_index, jnp.float32)
    y = jnp.dot(x.astype(jnp.float32), weight.astype(jnp.float32),
                precision=jax.lax.Precision.HIGHEST)
    return jnp.dot(a_hat, y, precision=jax.lax.Precision.HIGHEST)


if __name__ == "__main__":
    key = jax.random.PRNGKey(0)
    k_x, k_e, k_w = jax.random.split(key, 3)

    n_nodes = 256
    n_edges = 1024
    dim_in = 32
    dim_out = 64

    x = jax.random.normal(k_x, (n_nodes, dim_in), dtype=jnp.float32)
    edge_index = jax.random.randint(
        k_e, (2, n_edges), 0, n_nodes, dtype=jnp.int32)

    # Glorot-style init (same scale family as pyg.nn.GCNConv's linear layer).
    bound = jnp.sqrt(6.0 / (dim_in + dim_out))
    weight = jax.random.uniform(
        k_w, (dim_in, dim_out), jnp.float32, -bound, bound)

    # Small tiles -> a (2, 2) grid: exercises init / k-resident accumulation /
    # the VMEM-resident feature path with in-kernel pl.ds slicing.
    out = gcn_conv(x, edge_index, weight, tm_target=128, tk_target=128)
    out = jax.block_until_ready(out)

    ref = gcn_conv_reference(x, edge_index, weight)
    assert out.shape == (n_nodes, dim_out)
    assert jnp.allclose(out, ref, atol=2e-2, rtol=2e-2), (
        "mismatch vs reference: max abs err = %f"
        % float(jnp.max(jnp.abs(out - ref))))

    print("KERNEL_OK")
</pallas_src>

<mosaic_0001>
module attributes {stable_mosaic.version = 11 : i64} {
  func.func @kernel(%arg0: i32, %arg1: i32, %arg2: memref<128x128xbf16, #tpu.memory_space<vmem>>, %arg3: memref<256x128xbf16, #tpu.memory_space<vmem>>, %arg4: memref<128x128xf32, #tpu.memory_space<vmem>>) attributes {dimension_semantics = [#tpu.dimension_semantics<parallel>, #tpu.dimension_semantics<arbitrary>], iteration_bounds = array<i64: 2, 2>, scalar_prefetch = 0 : i64, scratch_operands = 0 : i64, tpu.core_type = #tpu.core_type<tc>, window_params = [{transform_indices = @transform_0, window_bounds = array<i64: 128, 128>}, {pipeline_mode = #tpu.pipeline_mode<synchronous>, transform_indices = @transform_1, window_bounds = array<i64: 256, 128>}, {transform_indices = @transform_2, window_bounds = array<i64: 128, 128>}]} {
    %c0_i32 = arith.constant 0 : i32
    %0 = arith.cmpi eq, %arg1, %c0_i32 : i32
    %1 = arith.extui %0 : i1 to i32
    %c0_i32_0 = arith.constant 0 : i32
    %2 = arith.cmpi ne, %1, %c0_i32_0 : i32
    scf.if %2 {
      %cst_7 = arith.constant 0.000000e+00 : f32
      %12 = vector.broadcast %cst_7 : f32 to vector<128x128xf32>
      %c0_8 = arith.constant 0 : index
      %c0_9 = arith.constant 0 : index
      %13 = vector.load %arg4[%c0_8, %c0_9] : memref<128x128xf32, #tpu.memory_space<vmem>>, vector<128x128xf32>
      tpu.vector_store %arg4[%c0_8, %c0_9], %12 {strides = array<i32>} : memref<128x128xf32, #tpu.memory_space<vmem>>, vector<128x128xf32>,
    } else {
    }
    %c128_i32 = arith.constant 128 : i32
    %3 = arith.muli %arg1, %c128_i32 : i32
    %4 = tpu.assume_multiple %3, 128 : i32
    %5 = arith.index_cast %4 : i32 to index
    %c0 = arith.constant 0 : index
    %6 = vector.load %arg3[%5, %c0] : memref<256x128xbf16, #tpu.memory_space<vmem>>, vector<128x128xbf16>
    %c0_1 = arith.constant 0 : index
    %c0_2 = arith.constant 0 : index
    %7 = vector.load %arg4[%c0_1, %c0_2] : memref<128x128xf32, #tpu.memory_space<vmem>>, vector<128x128xf32>
    %c0_3 = arith.constant 0 : index
    %c0_4 = arith.constant 0 : index
    %8 = vector.load %arg2[%c0_3, %c0_4] : memref<128x128xbf16, #tpu.memory_space<vmem>>, vector<128x128xbf16>
    %cst = arith.constant dense<0.000000e+00> : vector<128x128xf32>
    %9 = tpu.matmul %8, %6, %cst {dimension_numbers = #tpu.dot_dimension_numbers<[1], [0], [0], [1], [0, 0, 1, 1], [], []>} : vector<128x128xbf16>, vector<128x128xbf16>, vector<128x128xf32> -> vector<128x128xf32>
    %10 = arith.addf %7, %9 : vector<128x128xf32>
    %c0_5 = arith.constant 0 : index
    %c0_6 = arith.constant 0 : index
    %11 = vector.load %arg4[%c0_5, %c0_6] : memref<128x128xf32, #tpu.memory_space<vmem>>, vector<128x128xf32>
    tpu.vector_store %arg4[%c0_5, %c0_6], %10 {strides = array<i32>} : memref<128x128xf32, #tpu.memory_space<vmem>>, vector<128x128xf32>,
    return
  }
  func.func @transform_0(%arg0: i32, %arg1: i32) -> (i32, i32) {
    %c0_i32 = arith.constant 0 : i32
    return %arg0, %arg1 : i32, i32
  }
  func.func @transform_1(%arg0: i32, %arg1: i32) -> (i32, i32) {
    %c0_i32 = arith.constant 0 : i32
    %c0_i32_0 = arith.constant 0 : i32
    %c0_i32_1 = arith.constant 0 : i32
    return %c0_i32, %c0_i32_0 : i32, i32
  }
  func.func @transform_2(%arg0: i32, %arg1: i32) -> (i32, i32) {
    %c0_i32 = arith.constant 0 : i32
    %c0_i32_0 = arith.constant 0 : i32
    return %arg0, %c0_i32 : i32, i32
  }
}

</mosaic_0001>

<llo_original>
// kernel: tpu_custom_call.1
$region0: #{tpu_custom_call.1}
  #allocation0 [shape = 'u32[]', space=smem, size = 0x4, offset = 0x4, fixed_abs, tag = 'smem constant byte address 0x4 - core index']
  #allocation1 [shape = 'u32[144,128]{1,0:T(1,128)}', space=vmem, size = 0x12000, scoped, tag = 'internal scratch']
  %s0 = inlined_call_operand.hbm [shape: bf16[256,256], index: 0, kind: input, shape index: {}]
  %s1 = inlined_call_operand.hbm [shape: bf16[256,128], index: 1, kind: input, shape index: {}]
  %s2 = inlined_call_operand.hbm [shape: f32[256,128], index: 2, kind: output, shape index: {}]
  %s3 = sld [smem:[#allocation0]]
  $region53: #{tpu_custom_call.1} parent=0
    _
  %s5 = ssub.s32 1, %s3
  %s6 = scalar_select 0, %s5, %s3
  $region1: #{tpu_custom_call.1} parent=0
    #allocation2 [shape = 'u8[65536]{0}', space=vmem, size = 0x10000, scoped, tag = 'input window, operand 0']
    #allocation3 [shape = 's32[2]{0}', space=sflag, size = 0x8, scoped, tag = 'scoped memory for tpu_custom_call.1']
    #allocation4 [shape = 's32[2]{0}', space=sflag, size = 0x8, scoped, tag = 'scoped memory for tpu_custom_call.1']
    #allocation5 [shape = 'u8[65536]{0}', space=vmem, size = 0x10000, scoped, tag = 'input window, operand 1, single buffered']
    #allocation6 [shape = 's32[1]{0}', space=sflag, size = 0x4, scoped, tag = 'scoped memory for tpu_custom_call.1']
    #allocation7 [shape = 'u8[131072]{0}', space=vmem, size = 0x20000, scoped, tag = 'output window, operand 0']
    %7 = vsyncpa [#allocation3], 0
    %s8 = scalar_lea.sflag [#allocation3], 1
    %9 = vsyncpa %s8, 0
    %10 = vsyncpa [#allocation6], 0
    %11 = vsyncpa [#allocation4], 0
    %s12 = scalar_lea.sflag [#allocation4], 1
    %13 = vsyncpa %s12, 0
    loop: start=0, step=1, limit=6
    $region2: #{tpu_custom_call.1} parent=1 // loop_pre_header
      _
    $region3: #{tpu_custom_call.1} parent=1 // loop_header
      %s15 = sphi 0, %s19
      %p16 = scmp.ge.s32.totalorder %s15, 6
      %s22 = sphi 0, %s34
      %s23 = sphi 0, %s30
      %s24 = sphi 0, %s22
      %s25 = sphi 0, %s23
      %s26 = sphi 0, %s24
      %s27 = sphi 0, %s25
      %s39 = sphi 0, %s41
      %s42 = sphi 0, %s39
      %s43 = sphi 0, %s42
      %s59 = sphi 0, %s43
      %s63 = sphi 0, %s63
      %s65 = sphi 0, %s63
      %s66 = sphi 0, %s65
      %s80 = sphi 0, %s66
      %s86 = sphi 0, %s88
      %s89 = sphi 0, %s86
      %s90 = sphi 0, %s89
      %s106 = sphi 0, %s90
    $region4: #{tpu_custom_call.1} parent=1 // loop_header_branch
      %18 = sbr.rel (%p16) target = $region8
    $region5: #{tpu_custom_call.1} parent=1 // loop_body
      %s20 = ssub.s32 %s15, 1
      %s21 = ssub.s32 %s15, 2
      %s28 = sadd.s32 1, %s23
      %p29 = scmp.ge.s32.totalorder %s28, 2
      %s30 = scalar_select %p29, 0, %s28
      %s31 = sadd.s32 1, %s22
      %s32 = scalar_select %p29, %s31, %s22
      %p33 = scmp.ge.s32.totalorder %s32, 2
      %s34 = scalar_select %p33, 0, %s32
      %s35 = ssub.s32 %s22, %s34
      %s36 = ssub.s32 %s23, %s30
      %s37 = sor.u32 %s35, %s36
      %p38 = scmp.eq.s32.totalorder %s37, 0
      %s40 = sadd.s32 %s39, 1
      %s41 = scalar_select %p38, %s39, %s40
      %p44 = pneg %p38
      %p45 = scmp.eq.s32.totalorder %s15, 3
      %p46 = por %p44, %p45
      %p47 = scmp.ne.s32.totalorder %s39, %s42
      %p48 = scmp.eq.s32.totalorder %s15, 0
      %p49 = por %p47, %p48
      %p50 = scmp.ne.s32.totalorder %s39, %s42
      %p51 = scmp.eq.s32.totalorder %s20, 3
      %p52 = por %p50, %p51
      %p53 = scmp.ne.s32.totalorder %s42, %s43
      %p54 = scmp.eq.s32.totalorder %s20, 0
      %p55 = por %p53, %p54
      %p56 = scmp.ne.s32.totalorder %s42, %s43
      %p57 = scmp.eq.s32.totalorder %s21, 3
      %p58 = por %p56, %p57
      %p60 = scmp.ne.s32.totalorder %s43, %s59
      %p61 = scmp.eq.s32.totalorder %s21, 0
      %p62 = por %p60, %p61
      %s64 = sadd.s32 %s63, 1
      %p67 = scmp.eq.s32.totalorder %s15, 3
      %p68 = scmp.ne.s32.totalorder %s63, %s65
      %p69 = scmp.eq.s32.totalorder %s15, 0
      %p70 = por %p68, %p69
      %p71 = scmp.ne.s32.totalorder %s63, %s65
      %p72 = scmp.eq.s32.totalorder %s20, 3
      %p73 = por %p71, %p72
      %p74 = scmp.ne.s32.totalorder %s65, %s66
      %p75 = scmp.eq.s32.totalorder %s20, 0
      %p76 = por %p74, %p75
      %p77 = scmp.ne.s32.totalorder %s65, %s66
      %p78 = scmp.eq.s32.totalorder %s21, 3
      %p79 = por %p77, %p78
      %p81 = scmp.ne.s32.totalorder %s66, %s80
      %p82 = scmp.eq.s32.totalorder %s21, 0
      %p83 = por %p81, %p82
      %s84 = ssub.s32 %s22, %s34
      %p85 = scmp.eq.s32.totalorder %s84, 0
      %s87 = sadd.s32 %s86, 1
      %s88 = scalar_select %p85, %s86, %s87
      %p91 = pneg %p85
      %p92 = scmp.eq.s32.totalorder %s15, 3
      %p93 = por %p91, %p92
      %p94 = scmp.ne.s32.totalorder %s86, %s89
      %p95 = scmp.eq.s32.totalorder %s15, 0
      %p96 = por %p94, %p95
      %p97 = scmp.ne.s32.totalorder %s86, %s89
      %p98 = scmp.eq.s32.totalorder %s20, 3
      %p99 = por %p97, %p98
      %p100 = scmp.ne.s32.totalorder %s89, %s90
      %p101 = scmp.eq.s32.totalorder %s20, 0
      %p102 = por %p100, %p101
      %p103 = scmp.ne.s32.totalorder %s89, %s90
      %p104 = scmp.eq.s32.totalorder %s21, 3
      %p105 = por %p103, %p104
      %p107 = scmp.ne.s32.totalorder %s90, %s106
      %p108 = scmp.eq.s32.totalorder %s21, 0
      %p109 = por %p107, %p108
      %p110 = scmp.le.s32.totalorder 1, %s15
      %p111 = scmp.lt.s32.totalorder %s15, 5
      %p112 = pnand %p110, %p111
      %p113 = pneg %p112
      // Predicated region
      $region9: #{tpu_custom_call.1} parent=5 // pred_check
        _
      $region10: #{tpu_custom_call.1} parent=5 // pred_check_branch
        %115 = sbr.rel (%p112) target = $region12
      $region11: #{tpu_custom_call.1} parent=5 // pred_region
        %s116 = ssub.s32 %s15, 1
        // Predicated region
        $region13: #{tpu_custom_call.1} parent=11 // pred_check
          %p117 = pneg %p76
        $region14: #{tpu_custom_call.1} parent=11 // pred_check_branch
          %119 = sbr.rel (%p117) target = $region16
        $region15: #{tpu_custom_call.1} parent=11 // pred_region
          %s121 = ssub.s32 2048, 2048
          %122 = vsyncadd [#allocation6], %s121
          %s123 = sshll.u32 [#allocation5], 4
          %s124 = int_to_ptr.vmem [resolvable:$true] %s123
          %129 = dma.hbm_to_vmem [thread:$0]  %s1, 2048, %s124, [#allocation6], 64, 64, 4
        $region16: #{tpu_custom_call.1} parent=11 // pred_fallthru
          _
      $region12: #{tpu_custom_call.1} parent=5 // pred_fallthru
        _
      %p130 = scmp.lt.s32.totalorder %s15, 4
      // Predicated region
      $region17: #{tpu_custom_call.1} parent=5 // pred_check
        %p131 = pneg %p130
      $region18: #{tpu_custom_call.1} parent=5 // pred_check_branch
        %133 = sbr.rel (%p131) target = $region20
      $region19: #{tpu_custom_call.1} parent=5 // pred_region
        // Predicated region
        $region21: #{tpu_custom_call.1} parent=19 // pred_check
          %p134 = pneg %p49
        $region22: #{tpu_custom_call.1} parent=19 // pred_check_branch
          %136 = sbr.rel (%p134) target = $region24
        $region23: #{tpu_custom_call.1} parent=19 // pred_region
          %s137 = sand.u32 %s39, 1
          %s138 = scalar_lea.sflag [#allocation3], %s137
          %s139 = sand.u32 %s39, 1
          %s140 = smul.addr %s139, 64
          %s141 = scalar_lea.vmem [#allocation2], %s140
          %s142 = smul.u32 16, %s22
          %s144 = ssub.s32 1024, 1024
          %145 = vsyncadd %s138, %s144
          %s146 = smul.addr %s142, 2
          %s147 = sadd.s32 %s23, %s146
          %s148 = smul.addr %s147, 64
          %s149 = scalar_lea.hbm %s0, %s148
          %s150 = sshll.u32 %s141, 4
          %s151 = int_to_ptr.vmem [resolvable:$true] %s150
          %156 = dma.hbm_to_vmem [thread:$0]  %s149, 1024, %s151, %s138, 128, 64, 4
        $region24: #{tpu_custom_call.1} parent=19 // pred_fallthru
          _
      $region20: #{tpu_custom_call.1} parent=5 // pred_fallthru
        _
      %p157 = scmp.le.s32.totalorder 1, %s15
      %p158 = scmp.lt.s32.totalorder %s15, 5
      %p159 = pnand %p157, %p158
      %p160 = pneg %p159
      // Predicated region
      $region25: #{tpu_custom_call.1} parent=5 // pred_check
        _
      $region26: #{tpu_custom_call.1} parent=5 // pred_check_branch
        %162 = sbr.rel (%p159) target = $region28
      $region27: #{tpu_custom_call.1} parent=5 // pred_region
        %s163 = ssub.s32 %s15, 1
        %s164 = sand.u32 %s42, 1
        %s165 = scalar_lea.sflag [#allocation3], %s164
        %s166 = sand.u32 %s42, 1
        %s167 = smul.addr %s166, 64
        %s168 = scalar_lea.vmem [#allocation2], %s167
        // Predicated region
        $region29: #{tpu_custom_call.1} parent=27 // pred_check
          %p169 = pneg %p55
        $region30: #{tpu_custom_call.1} parent=27 // pred_check_branch
          %171 = sbr.rel (%p169) target = $region32
        $region31: #{tpu_custom_call.1} parent=27 // pred_region
          %172 = dma.done %s165, 1024
        $region32: #{tpu_custom_call.1} parent=27 // pred_fallthru
          _
        // Predicated region
        $region33: #{tpu_custom_call.1} parent=27 // pred_check
          %p173 = pneg %p76
        $region34: #{tpu_custom_call.1} parent=27 // pred_check_branch
          %175 = sbr.rel (%p173) target = $region36
        $region35: #{tpu_custom_call.1} parent=27 // pred_region
          %176 = dma.done [#allocation6], 2048
        $region36: #{tpu_custom_call.1} parent=27 // pred_fallthru
          _
        %s177 = sand.u32 %s42, 1
        %s178 = scalar_lea.sflag [#allocation3], %s177
        %s179 = sand.u32 %s42, 1
        %s180 = smul.addr %s179, 64
        %s181 = scalar_lea.vmem [#allocation2], %s180
        %p182 = pneg %p55
        %p183 = pneg %p52
        %p184 = pneg %p76
        %p185 = pneg %p73
        %p186 = pneg %p102
        %p187 = pneg %p99
        %s188 = sand.u32 %s89, 1
        %s189 = scalar_lea.sflag [#allocation4], %s188
        %s190 = sand.u32 %s89, 1
        %s191 = smul.addr %s190, 128
        %s192 = scalar_lea.vmem [#allocation7], %s191
        %s193 = smul.u32 16, %s24
        %s194 = smul.u32 16, %s24
        %p196 = scmp.eq.s32.totalorder %s25, 0
        // Predicated region
        $region37: #{tpu_custom_call.1} parent=27 // pred_check
          %p197 = pneg %p196
        $region38: #{tpu_custom_call.1} parent=27 // pred_check_branch
          %199 = sbr.rel (%p197) target = $region40
        $region39: #{tpu_custom_call.1} parent=27 // pred_region
          %200 = vst [vmem:[%s192] sm:$0xff] 0.0
          %201 = vst [vmem:[%s192 + $0x8] sm:$0xff] 0.0
          %202 = vst [vmem:[%s192 + $0x10] sm:$0xff] 0.0
          %203 = vst [vmem:[%s192 + $0x18] sm:$0xff] 0.0
          %204 = vst [vmem:[%s192 + $0x20] sm:$0xff] 0.0
          %205 = vst [vmem:[%s192 + $0x28] sm:$0xff] 0.0
          %206 = vst [vmem:[%s192 + $0x30] sm:$0xff] 0.0
          %207 = vst [vmem:[%s192 + $0x38] sm:$0xff] 0.0
          %208 = vst [vmem:[%s192 + $0x40] sm:$0xff] 0.0
          %209 = vst [vmem:[%s192 + $0x48] sm:$0xff] 0.0
          %210 = vst [vmem:[%s192 + $0x50] sm:$0xff] 0.0
          %211 = vst [vmem:[%s192 + $0x58] sm:$0xff] 0.0
          %212 = vst [vmem:[%s192 + $0x60] sm:$0xff] 0.0
          %213 = vst [vmem:[%s192 + $0x68] sm:$0xff] 0.0
          %214 = vst [vmem:[%s192 + $0x70] sm:$0xff] 0.0
          %215 = vst [vmem:[%s192 + $0x78] sm:$0xff] 0.0
        $region40: #{tpu_custom_call.1} parent=27 // pred_fallthru
          _
        %s216 = smul.u32 %s25, 128
        %s217 = sshra.s32 %s216, 3
        %s218 = sand.u32 %s216, 7
        %s219 = smul.addr %s217, 4
        %s220 = scalar_lea.vmem [#allocation5], %s219
        %v221 = vld [vmem:[%s220] sm:$0xf]
        %v222 = vld [vmem:[%s220 + $0x4] sm:$0xf]
        %v223 = vld [vmem:[%s220 + $0x8] sm:$0xf]
        %v224 = vld [vmem:[%s220 + $0xc] sm:$0xf]
        %v225 = vld [vmem:[%s220 + $0x10] sm:$0xf]
        %v226 = vld [vmem:[%s220 + $0x14] sm:$0xf]
        %v227 = vld [vmem:[%s220 + $0x18] sm:$0xf]
        %v228 = vld [vmem:[%s220 + $0x1c] sm:$0xf]
        %v229 = vld [vmem:[%s220 + $0x20] sm:$0xf]
        %v230 = vld [vmem:[%s220 + $0x24] sm:$0xf]
        %v231 = vld [vmem:[%s220 + $0x28] sm:$0xf]
        %v232 = vld [vmem:[%s220 + $0x2c] sm:$0xf]
        %v233 = vld [vmem:[%s220 + $0x30] sm:$0xf]
        %v234 = vld [vmem:[%s220 + $0x34] sm:$0xf]
        %v235 = vld [vmem:[%s220 + $0x38] sm:$0xf]
        %v236 = vld [vmem:[%s220 + $0x3c] sm:$0xf]
        %v237 = vld [vmem:[%s192] sm:$0xff]
        %v238 = vld [vmem:[%s192 + $0x8] sm:$0xff]
        %v239 = vld [vmem:[%s192 + $0x10] sm:$0xff]
        %v240 = vld [vmem:[%s192 + $0x18] sm:$0xff]
        %v241 = vld [vmem:[%s192 + $0x20] sm:$0xff]
        %v242 = vld [vmem:[%s192 + $0x28] sm:$0xff]
        %v243 = vld [vmem:[%s192 + $0x30] sm:$0xff]
        %v244 = vld [vmem:[%s192 + $0x38] sm:$0xff]
        %v245 = vld [vmem:[%s192 + $0x40] sm:$0xff]
        %v246 = vld [vmem:[%s192 + $0x48] sm:$0xff]
        %v247 = vld [vmem:[%s192 + $0x50] sm:$0xff]
        %v248 = vld [vmem:[%s192 + $0x58] sm:$0xff]
        %v249 = vld [vmem:[%s192 + $0x60] sm:$0xff]
        %v250 = vld [vmem:[%s192 + $0x68] sm:$0xff]
        %v251 = vld [vmem:[%s192 + $0x70] sm:$0xff]
        %v252 = vld [vmem:[%s192 + $0x78] sm:$0xff]
        %v253 = vld [vmem:[%s168] sm:$0xf]
        %v254 = vld [vmem:[%s168 + $0x4] sm:$0xf]
        %v255 = vld [vmem:[%s168 + $0x8] sm:$0xf]
        %v256 = vld [vmem:[%s168 + $0xc] sm:$0xf]
        %v257 = vld [vmem:[%s168 + $0x10] sm:$0xf]
        %v258 = vld [vmem:[%s168 + $0x14] sm:$0xf]
        %v259 = vld [vmem:[%s168 + $0x18] sm:$0xf]
        %v260 = vld [vmem:[%s168 + $0x1c] sm:$0xf]
        %v261 = vld [vmem:[%s168 + $0x20] sm:$0xf]
        %v262 = vld [vmem:[%s168 + $0x24] sm:$0xf]
        %v263 = vld [vmem:[%s168 + $0x28] sm:$0xf]
        %v264 = vld [vmem:[%s168 + $0x2c] sm:$0xf]
        %v265 = vld [vmem:[%s168 + $0x30] sm:$0xf]
        %v266 = vld [vmem:[%s168 + $0x34] sm:$0xf]
        %v267 = vld [vmem:[%s168 + $0x38] sm:$0xf]
        %v268 = vld [vmem:[%s168 + $0x3c] sm:$0xf]
        %v285 = vunpack.c.l.b16 %v253
        %v286 = vunpack.c.l.b16 %v254
        %v287 = vunpack.c.l.b16 %v255
        %v288 = vunpack.c.l.b16 %v256
        %v289 = vunpack.c.l.b16 %v257
        %v290 = vunpack.c.l.b16 %v258
        %v291 = vunpack.c.l.b16 %v259
        %v292 = vunpack.c.l.b16 %v260
        %v293 = vunpack.c.l.b16 %v261
        %v294 = vunpack.c.l.b16 %v262
        %v295 = vunpack.c.l.b16 %v263
        %v296 = vunpack.c.l.b16 %v264
        %v297 = vunpack.c.l.b16 %v265
        %v298 = vunpack.c.l.b16 %v266
        %v299 = vunpack.c.l.b16 %v267
        %v300 = vunpack.c.l.b16 %v268
        %v301 = vpack.c.b16 %v286, %v285
        %v302 = vpack.c.b16 %v288, %v287
        %v303 = vpack.c.b16 %v290, %v289
        %v304 = vpack.c.b16 %v292, %v291
        %v305 = vpack.c.b16 %v294, %v293
        %v306 = vpack.c.b16 %v296, %v295
        %v307 = vpack.c.b16 %v298, %v297
        %v308 = vpack.c.b16 %v300, %v299
        %v333 = vunpack.c.l.b16 %v221
        %v334 = vunpack.c.l.b16 %v222
        %v335 = vunpack.c.l.b16 %v223
        %v336 = vunpack.c.l.b16 %v224
        %v337 = vunpack.c.l.b16 %v225
        %v338 = vunpack.c.l.b16 %v226
        %v339 = vunpack.c.l.b16 %v227
        %v340 = vunpack.c.l.b16 %v228
        %v341 = vunpack.c.l.b16 %v229
        %v342 = vunpack.c.l.b16 %v230
        %v343 = vunpack.c.l.b16 %v231
        %v344 = vunpack.c.l.b16 %v232
        %v345 = vunpack.c.l.b16 %v233
        %v346 = vunpack.c.l.b16 %v234
        %v347 = vunpack.c.l.b16 %v235
        %v348 = vunpack.c.l.b16 %v236
        %v349 = vpack.c.b16 %v334, %v333
        %v350 = vpack.c.b16 %v336, %v335
        %v351 = vpack.c.b16 %v338, %v337
        %v352 = vpack.c.b16 %v340, %v339
        %v353 = vpack.c.b16 %v342, %v341
        %v354 = vpack.c.b16 %v344, %v343
        %v355 = vpack.c.b16 %v346, %v345
        %v356 = vpack.c.b16 %v348, %v347
        %365 = vmatprep.subr.bf16.mxu0 0
        %366 = vmatpush1.bf16.msra.mxu0 %v356
        %367 = vmatprep.subr.bf16.mxu0 0
        %368 = vmatpush1.bf16.msra.mxu0 %v355
        %369 = vmatprep.subr.bf16.mxu0 0
        %370 = vmatpush1.bf16.msra.mxu0 %v354
        %371 = vmatprep.subr.bf16.mxu0 0
        %372 = vmatpush1.bf16.msra.mxu0 %v353
        %373 = vmatprep.subr.bf16.mxu0 0
        %374 = vmatpush1.bf16.msra.mxu0 %v352
        %375 = vmatprep.subr.bf16.mxu0 0
        %376 = vmatpush1.bf16.msra.mxu0 %v351
        %377 = vmatprep.subr.bf16.mxu0 0
        %378 = vmatpush1.bf16.msra.mxu0 %v350
        %379 = vmatprep.subr.bf16.mxu0 0
        %380 = vmatpush1.bf16.msra.mxu0 %v349
        %381 = vmatprep.subr.bf16.mxu0 0
        %382 = vmatpush2.bf16.msra.mxu0 0
        %383 = vmatprep.subr.bf16.mxu0 0
        %384 = vmatpush2.bf16.msra.mxu0 0
        %385 = vmatprep.subr.bf16.mxu0 0
        %386 = vmatpush2.bf16.msra.mxu0 0
        %387 = vmatprep.subr.bf16.mxu0 0
        %388 = vmatpush2.bf16.msra.mxu0 0
        %389 = vmatprep.subr.bf16.mxu0 0
        %390 = vmatpush2.bf16.msra.mxu0 0
        %391 = vmatprep.subr.bf16.mxu0 0
        %392 = vmatpush2.bf16.msra.mxu0 0
        %393 = vmatprep.subr.bf16.mxu0 0
        %394 = vmatpush2.bf16.msra.mxu0 0
        %395 = vmatprep.subr.bf16.mxu0 0
        %396 = vmatpush2.bf16.msra.mxu0 0
        %397 = vmatprep.mubr.bf16.mxu0 0
        %398 = vmatmul.mubr.bf16.gmra.mxu0 %v301
        %v399 = vpop.f32.mrf.mxu0
        %v400 = vadd.f32 0.0, %v399
        %v401 = vpop.f32.mrf.mxu0
        %v402 = vpop.f32.mrf.mxu0
        %v403 = vadd.f32 0.0, %v402
        %v404 = vpop.f32.mrf.mxu0
        %405 = vmatprep.mubr.bf16.mxu0 0
        %406 = vmatmul.mubr.bf16.gmra.mxu0 %v302
        %v407 = vpop.f32.mrf.mxu0
        %v408 = vadd.f32 0.0, %v407
        %v409 = vpop.f32.mrf.mxu0
        %v410 = vpop.f32.mrf.mxu0
        %v411 = vadd.f32 0.0, %v410
        %v412 = vpop.f32.mrf.mxu0
        %413 = vmatprep.mubr.bf16.mxu0 0
        %414 = vmatmul.mubr.bf16.gmra.mxu0 %v303
        %v415 = vpop.f32.mrf.mxu0
        %v416 = vadd.f32 0.0, %v415
        %v417 = vpop.f32.mrf.mxu0
        %v418 = vpop.f32.mrf.mxu0
        %v419 = vadd.f32 0.0, %v418
        %v420 = vpop.f32.mrf.mxu0
        %421 = vmatprep.mubr.bf16.mxu0 0
        %422 = vmatmul.mubr.bf16.gmra.mxu0 %v304
        %v423 = vpop.f32.mrf.mxu0
        %v424 = vadd.f32 0.0, %v423
        %v425 = vpop.f32.mrf.mxu0
        %v426 = vpop.f32.mrf.mxu0
        %v427 = vadd.f32 0.0, %v426
        %v428 = vpop.f32.mrf.mxu0
        %429 = vmatprep.mubr.bf16.mxu0 0
        %430 = vmatmul.mubr.bf16.gmra.mxu0 %v305
        %v431 = vpop.f32.mrf.mxu0
        %v432 = vadd.f32 0.0, %v431
        %v433 = vpop.f32.mrf.mxu0
        %v434 = vpop.f32.mrf.mxu0
        %v435 = vadd.f32 0.0, %v434
        %v436 = vpop.f32.mrf.mxu0
        %437 = vmatprep.mubr.bf16.mxu0 0
        %438 = vmatmul.mubr.bf16.gmra.mxu0 %v306
        %v439 = vpop.f32.mrf.mxu0
        %v440 = vadd.f32 0.0, %v439
        %v441 = vpop.f32.mrf.mxu0
        %v442 = vpop.f32.mrf.mxu0
        %v443 = vadd.f32 0.0, %v442
        %v444 = vpop.f32.mrf.mxu0
        %445 = vmatprep.mubr.bf16.mxu0 0
        %446 = vmatmul.mubr.bf16.gmra.mxu0 %v307
        %v447 = vpop.f32.mrf.mxu0
        %v448 = vadd.f32 0.0, %v447
        %v449 = vpop.f32.mrf.mxu0
        %v450 = vpop.f32.mrf.mxu0
        %v451 = vadd.f32 0.0, %v450
        %v452 = vpop.f32.mrf.mxu0
        %453 = vmatprep.mubr.bf16.mxu0 0
        %454 = vmatmul.mubr.bf16.gmra.mxu0 %v308
        %v455 = vpop.f32.mrf.mxu0
        %v456 = vadd.f32 0.0, %v455
        %v457 = vpop.f32.mrf.mxu0
        %v458 = vpop.f32.mrf.mxu0
        %v459 = vadd.f32 0.0, %v458
        %v460 = vpop.f32.mrf.mxu0
        %461 = vdwg.mxu0
        %v462 = vadd.f32 %v237, %v400
        %v463 = vadd.f32 %v238, %v403
        %v464 = vadd.f32 %v239, %v408
        %v465 = vadd.f32 %v240, %v411
        %v466 = vadd.f32 %v241, %v416
        %v467 = vadd.f32 %v242, %v419
        %v468 = vadd.f32 %v243, %v424
        %v469 = vadd.f32 %v244, %v427
        %v470 = vadd.f32 %v245, %v432
        %v471 = vadd.f32 %v246, %v435
        %v472 = vadd.f32 %v247, %v440
        %v473 = vadd.f32 %v248, %v443
        %v474 = vadd.f32 %v249, %v448
        %v475 = vadd.f32 %v250, %v451
        %v476 = vadd.f32 %v251, %v456
        %v477 = vadd.f32 %v252, %v459
        %478 = vst [vmem:[%s192] sm:$0xff] %v462
        %479 = vst [vmem:[%s192 + $0x8] sm:$0xff] %v463
        %480 = vst [vmem:[%s192 + $0x10] sm:$0xff] %v464
        %481 = vst [vmem:[%s192 + $0x18] sm:$0xff] %v465
        %482 = vst [vmem:[%s192 + $0x20] sm:$0xff] %v466
        %483 = vst [vmem:[%s192 + $0x28] sm:$0xff] %v467
        %484 = vst [vmem:[%s192 + $0x30] sm:$0xff] %v468
        %485 = vst [vmem:[%s192 + $0x38] sm:$0xff] %v469
        %486 = vst [vmem:[%s192 + $0x40] sm:$0xff] %v470
        %487 = vst [vmem:[%s192 + $0x48] sm:$0xff] %v471
        %488 = vst [vmem:[%s192 + $0x50] sm:$0xff] %v472
        %489 = vst [vmem:[%s192 + $0x58] sm:$0xff] %v473
        %490 = vst [vmem:[%s192 + $0x60] sm:$0xff] %v474
        %491 = vst [vmem:[%s192 + $0x68] sm:$0xff] %v475
        %492 = vst [vmem:[%s192 + $0x70] sm:$0xff] %v476
        %493 = vst [vmem:[%s192 + $0x78] sm:$0xff] %v477
        %s494 = sand.u32 %s89, 1
        %s495 = scalar_lea.sflag [#allocation4], %s494
        %s496 = sand.u32 %s89, 1
        %s497 = smul.addr %s496, 128
        %s498 = scalar_lea.vmem [#allocation7], %s497
        // Predicated region
        $region41: #{tpu_custom_call.1} parent=27 // pred_check
          %p499 = pneg %p99
        $region42: #{tpu_custom_call.1} parent=27 // pred_check_branch
          %501 = sbr.rel (%p499) target = $region44
        $region43: #{tpu_custom_call.1} parent=27 // pred_region
          %s502 = smul.u32 16, %s24
          %s504 = ssub.s32 2048, 2048
          %505 = vsyncadd %s495, %s504
          %s506 = smul.addr %s502, 128
          %s507 = scalar_lea.hbm %s2, %s506
          %s508 = sshll.u32 %s498, 4
          %s509 = int_to_ptr.vmem [resolvable:$true] %s508
          %514 = dma.vmem_to_hbm [thread:$0]  %s509, 2048, %s507, %s495, 128, 128, 8
        $region44: #{tpu_custom_call.1} parent=27 // pred_fallthru
          _
      $region28: #{tpu_custom_call.1} parent=5 // pred_fallthru
        _
      %p515 = scmp.le.s32.totalorder 2, %s15
      // Predicated region
      $region45: #{tpu_custom_call.1} parent=5 // pred_check
        %p516 = pneg %p515
      $region46: #{tpu_custom_call.1} parent=5 // pred_check_branch
        %518 = sbr.rel (%p516) target = $region48
      $region47: #{tpu_custom_call.1} parent=5 // pred_region
        %s519 = ssub.s32 %s15, 2
        // Predicated region
        $region49: #{tpu_custom_call.1} parent=47 // pred_check
          %p520 = pneg %p105
        $region50: #{tpu_custom_call.1} parent=47 // pred_check_branch
          %522 = sbr.rel (%p520) target = $region52
        $region51: #{tpu_custom_call.1} parent=47 // pred_region
          %s523 = sand.u32 %s90, 1
          %s524 = scalar_lea.sflag [#allocation4], %s523
          %s525 = sand.u32 %s90, 1
          %s526 = smul.addr %s525, 128
          %s527 = scalar_lea.vmem [#allocation7], %s526
          %528 = dma.done %s524, 2048
        $region52: #{tpu_custom_call.1} parent=47 // pred_fallthru
          _
      $region48: #{tpu_custom_call.1} parent=5 // pred_fallthru
        _
    $region6: #{tpu_custom_call.1} parent=1 // loop_footer
      %s19 = sadd.s32 1, %s15
    $region7: #{tpu_custom_call.1} parent=1 // loop_footer_branch
      %14 = sbr.rel target = $region3
    $region8: #{tpu_custom_call.1} parent=1 // loop_exit
      _
    %529 = vsyncpa [#allocation3], 1
    %s530 = scalar_lea.sflag [#allocation3], 1
    %531 = vsyncpa %s530, 1
    %532 = vsyncpa [#allocation6], 1
    %533 = vsyncpa [#allocation4], 1
    %s534 = scalar_lea.sflag [#allocation4], 1
    %535 = vsyncpa %s534, 1

</llo_original>
